<compile_context>
chip_gen: v7x
topology: tpu7x:2x2x1
jax: 0.10.0
libtpu: 0.0.40
codegen_flags: <defaults>
</compile_context>

<pallas_src>
import functools

import jax
import jax.numpy as jnp
from jax import lax
from jax.experimental import pallas as pl
from jax.experimental.pallas import tpu as pltpu


def _lm_head_kernel(x_ref, wd_ref, bd_ref, gamma_ref, beta_ref,
                    wdec_ref, bdec_ref, o_ref, y_ref, *, eps):
    # x_ref:      (TM, H)   features row tile (input dtype, f32 or bf16)
    # wd_ref:     (H, H)    bf16 dense weight, pre-transposed (h = x @ wd)
    # bd_ref:     (1, H)    f32  dense bias
    # gamma/beta: (1, H)    f32  LayerNorm affine params
    # wdec_ref:   (H, TN)   bf16 decoder weight column tile (pre-transposed)
    # bdec_ref:   (1, TN)   f32  decoder bias column tile
    # o_ref:      (TM, TN)  output logits tile
    # y_ref:      (TM, H)   bf16 VMEM scratch caching post-LN + residual act.
    j = pl.program_id(1)

    # Dense -> gelu -> LayerNorm -> residual computed once per row tile (on
    # the first decoder-column tile); reused for all other column tiles.
    @pl.when(j == 0)
    def _():
        x = x_ref[...]
        xf = x.astype(jnp.float32)
        h = jnp.dot(x.astype(jnp.bfloat16), wd_ref[...],
                    preferred_element_type=jnp.float32) + bd_ref[...]
        # exact (erf) gelu, matching torch.nn.functional.gelu default
        g = 0.5 * h * (1.0 + lax.erf(h * 0.7071067811865476))
        mean = jnp.mean(g, axis=-1, keepdims=True)
        cg = g - mean
        var = jnp.mean(cg * cg, axis=-1, keepdims=True)
        ln = cg * lax.rsqrt(var + eps) * gamma_ref[...] + beta_ref[...]
        y_ref[...] = (ln + xf).astype(y_ref.dtype)   # residual add in f32

    o_ref[...] = (jnp.dot(y_ref[...], wdec_ref[...],
                          preferred_element_type=jnp.float32)
                  + bdec_ref[...]).astype(o_ref.dtype)


def _round_up(x, m):
    return pl.cdiv(x, m) * m


def _choose_tm(n, tm):
    """Row tile: <= tm, multiple of 8, balanced so padding waste is < 8/tile."""
    n8 = _round_up(n, 8)
    if n8 <= tm:
        return n8
    tiles = pl.cdiv(n, tm)
    return _round_up(pl.cdiv(n, tiles), 8)


def prepare_lm_head_params(params, *, tn=1024):
    """One-time weight layout prep (do NOT run this per forward call).

    Returns decoder weight as a pre-transposed, bf16, label-padded (H, L_pad)
    array plus matching bias, and the dense/LN params in kernel layout.
    """
    H = params["dense_w"].shape[0]
    L = params["dec_w"].shape[0]
    tn_eff = min(_round_up(tn, 128), _round_up(L, 128))   # lane-dense tile
    l_pad = _round_up(L, tn_eff)

    wdec_t = params["dec_w"].T.astype(jnp.bfloat16)        # (H, L)
    bdec = params["dec_b"].reshape(1, L).astype(jnp.float32)
    if l_pad != L:
        wdec_t = jnp.pad(wdec_t, ((0, 0), (0, l_pad - L)))
        bdec = jnp.pad(bdec, ((0, 0), (0, l_pad - L)))

    return {
        "dense_w_t": params["dense_w"].T.astype(jnp.bfloat16),   # (H, H)
        "dense_b": params["dense_b"].reshape(1, H).astype(jnp.float32),
        "ln_w": params["ln_w"].reshape(1, H).astype(jnp.float32),
        "ln_b": params["ln_b"].reshape(1, H).astype(jnp.float32),
        "dec_w_t": wdec_t,                                        # (H, L_pad)
        "dec_b": bdec,                                            # (1, L_pad)
        "num_labels": L,
        "tn": tn_eff,
    }


def roberta_lm_head(features, prepared, *, eps=1e-5, tm=512,
                    out_dtype=jnp.bfloat16, decoder_buffers=2):
    """features: [B, S, H]. Returns logits [B, S, num_labels] in out_dtype."""
    B, S, H = features.shape
    L = prepared["num_labels"]
    tn_eff = prepared["tn"]
    l_pad = prepared["dec_w_t"].shape[1]
    N = B * S

    tm_eff = _choose_tm(N, tm)
    n_pad = _round_up(N, tm_eff)

    x2d = features.reshape(N, H)          # keep input dtype; no forced f32 copy
    if n_pad != N:
        x2d = jnp.pad(x2d, ((0, n_pad - N), (0, 0)))

    grid = (n_pad // tm_eff, l_pad // tn_eff)
    kernel = functools.partial(_lm_head_kernel, eps=eps)

    # Grid-invariant operands: fetched once, so single-buffer them.
    const_mode = pl.Buffered(1)
    if decoder_buffers == 2:
        wdec_spec = pl.BlockSpec((H, tn_eff), lambda i, j: (0, j))
        bdec_spec = pl.BlockSpec((1, tn_eff), lambda i, j: (0, j))
    else:
        # e.g. decoder_buffers=3 on v5e if the weight DMA is still exposed.
        wdec_spec = pl.BlockSpec((H, tn_eff), lambda i, j: (0, j),
                                 pipeline_mode=pl.Buffered(decoder_buffers))
        bdec_spec = pl.BlockSpec((1, tn_eff), lambda i, j: (0, j),
                                 pipeline_mode=pl.Buffered(decoder_buffers))

    out = pl.pallas_call(
        kernel,
        out_shape=jax.ShapeDtypeStruct((n_pad, l_pad), out_dtype),
        grid_spec=pltpu.PrefetchScalarGridSpec(
            num_scalar_prefetch=0,
            grid=grid,
            in_specs=[
                pl.BlockSpec((tm_eff, H), lambda i, j: (i, 0)),   # features
                pl.BlockSpec((H, H), lambda i, j: (0, 0),         # dense W^T
                             pipeline_mode=const_mode),
                pl.BlockSpec((1, H), lambda i, j: (0, 0),         # dense b
                             pipeline_mode=const_mode),
                pl.BlockSpec((1, H), lambda i, j: (0, 0),         # ln gamma
                             pipeline_mode=const_mode),
                pl.BlockSpec((1, H), lambda i, j: (0, 0),         # ln beta
                             pipeline_mode=const_mode),
                wdec_spec,                                        # decoder W^T
                bdec_spec,                                        # decoder b
            ],
            out_specs=pl.BlockSpec((tm_eff, tn_eff), lambda i, j: (i, j)),
            scratch_shapes=[pltpu.VMEM((tm_eff, H), jnp.bfloat16)],
        ),
        compiler_params=pltpu.CompilerParams(
            # Rows parallel (megacore / v7x 2-TC sharding keeps the prologue
            # un-duplicated); label axis arbitrary + innermost.
            dimension_semantics=("parallel", "arbitrary"),
            vmem_limit_bytes=48 * 1024 * 1024,
        ),
    )(x2d, prepared["dense_w_t"], prepared["dense_b"], prepared["ln_w"],
      prepared["ln_b"], prepared["dec_w_t"], prepared["dec_b"])

    return out[:N, :L].reshape(B, S, L)


def _reference(features, params, eps=1e-5):
    """Pure-JAX f32 reference of the PyTorch forward."""
    x = features @ params["dense_w"].T + params["dense_b"]
    x = 0.5 * x * (1.0 + lax.erf(x / jnp.sqrt(2.0)))
    mean = jnp.mean(x, axis=-1, keepdims=True)
    var = jnp.mean((x - mean) ** 2, axis=-1, keepdims=True)
    x = (x - mean) * lax.rsqrt(var + eps) * params["ln_w"] + params["ln_b"]
    x = (x + features) @ params["dec_w"].T + params["dec_b"]
    return x


def _make_params(key, H, L):
    k_dw, k_db, k_decw = jax.random.split(key, 3)
    return {
        # nn.Linear(hidden, hidden): weight (out, in), bias (out,)
        "dense_w": jax.random.normal(k_dw, (H, H), dtype=jnp.float32) * 0.05,
        "dense_b": jax.random.normal(k_db, (H,), dtype=jnp.float32) * 0.05,
        # nn.LayerNorm default init
        "ln_w": jnp.ones((H,), dtype=jnp.float32),
        "ln_b": jnp.zeros((H,), dtype=jnp.float32),
        # nn.Linear(hidden, num_labels); bias tied to self.bias = zeros
        "dec_w": jax.random.normal(k_decw, (L, H), dtype=jnp.float32) * 0.05,
        "dec_b": jnp.zeros((L,), dtype=jnp.float32),
    }


if __name__ == "__main__":
    eps = 1e-5
    key = jax.random.PRNGKey(0)
    k_feat1, k_par1, k_feat2, k_par2 = jax.random.split(key, 4)

    # Test 1: small config (batch=2, seq=8, hidden=32, num_labels=16),
    # default tiles, default bf16 logits.
    B, S, H, L = 2, 8, 32, 16
    features = jax.random.normal(k_feat1, (B, S, H), dtype=jnp.float32)
    params = _make_params(k_par1, H, L)
    prepared = prepare_lm_head_params(params)          # one-time weight prep

    out = jax.block_until_ready(roberta_lm_head(features, params and prepared,
                                                eps=eps))
    ref = _reference(features, params, eps=eps)
    assert out.shape == (B, S, L)
    # bf16 matmul inputs + bf16 logits vs. the all-f32 reference.
    assert jnp.allclose(out.astype(jnp.float32), ref, atol=5e-2, rtol=5e-2), \
        "mismatch vs reference (test 1)"

    # Test 2: exercises the multi-tile path (row rebalancing + padding,
    # multiple decoder column tiles, scratch reuse across the label axis),
    # with f32 logits.
    B2, S2, H2, L2 = 2, 40, 128, 300
    features2 = jax.random.normal(k_feat2, (B2, S2, H2), dtype=jnp.float32)
    params2 = _make_params(k_par2, H2, L2)
    prepared2 = prepare_lm_head_params(params2, tn=128)

    out2 = jax.block_until_ready(
        roberta_lm_head(features2, prepared2, eps=eps, tm=32,
                        out_dtype=jnp.float32))
    ref2 = _reference(features2, params2, eps=eps)
    assert out2.shape == (B2, S2, L2)
    assert jnp.allclose(out2, ref2, atol=5e-2, rtol=5e-2), \
        "mismatch vs reference (test 2)"

    print("KERNEL_OK")
</pallas_src>

<mosaic_0001>
module attributes {stable_mosaic.version = 11 : i64} {
  func.func @_lm_head_kernel(%arg0: i32, %arg1: i32, %arg2: memref<16x32xf32, #tpu.memory_space<vmem>>, %arg3: memref<32x32xbf16, #tpu.memory_space<vmem>>, %arg4: memref<1x32xf32, #tpu.memory_space<vmem>>, %arg5: memref<1x32xf32, #tpu.memory_space<vmem>>, %arg6: memref<1x32xf32, #tpu.memory_space<vmem>>, %arg7: memref<32x128xbf16, #tpu.memory_space<vmem>>, %arg8: memref<1x128xf32, #tpu.memory_space<vmem>>, %arg9: memref<16x128xbf16, #tpu.memory_space<vmem>>, %arg10: memref<16x32xbf16, #tpu.memory_space<vmem>>) attributes {dimension_semantics = [#tpu.dimension_semantics<parallel>, #tpu.dimension_semantics<arbitrary>], iteration_bounds = array<i64: 1, 1>, scalar_prefetch = 0 : i64, scratch_operands = 1 : i64, tpu.core_type = #tpu.core_type<tc>, window_params = [{transform_indices = @transform_0, window_bounds = array<i64: 16, 32>}, {pipeline_mode = #tpu.pipeline_mode<synchronous>, transform_indices = @transform_1, window_bounds = array<i64: 32, 32>}, {pipeline_mode = #tpu.pipeline_mode<synchronous>, transform_indices = @transform_2, window_bounds = array<i64: 1, 32>}, {pipeline_mode = #tpu.pipeline_mode<synchronous>, transform_indices = @transform_3, window_bounds = array<i64: 1, 32>}, {pipeline_mode = #tpu.pipeline_mode<synchronous>, transform_indices = @transform_4, window_bounds = array<i64: 1, 32>}, {transform_indices = @transform_5, window_bounds = array<i64: 32, 128>}, {transform_indices = @transform_6, window_bounds = array<i64: 1, 128>}, {transform_indices = @transform_7, window_bounds = array<i64: 16, 128>}]} {
    %c0_i32 = arith.constant 0 : i32
    %0 = arith.cmpi eq, %arg1, %c0_i32 : i32
    %1 = arith.extui %0 : i1 to i32
    %c0_i32_0 = arith.constant 0 : i32
    %2 = arith.cmpi ne, %1, %c0_i32_0 : i32
    scf.if %2 {
      %c0_8 = arith.constant 0 : index
      %c0_9 = arith.constant 0 : index
      %11 = vector.load %arg2[%c0_8, %c0_9] : memref<16x32xf32, #tpu.memory_space<vmem>>, vector<16x32xf32>
      %12 = arith.truncf %11 : vector<16x32xf32> to vector<16x32xbf16>
      %c0_10 = arith.constant 0 : index
      %c0_11 = arith.constant 0 : index
      %13 = vector.load %arg3[%c0_10, %c0_11] : memref<32x32xbf16, #tpu.memory_space<vmem>>, vector<32x32xbf16>
      %cst_12 = arith.constant dense<0.000000e+00> : vector<16x32xf32>
      %14 = tpu.matmul %12, %13, %cst_12 {dimension_numbers = #tpu.dot_dimension_numbers<[1], [0], [0], [1], [0, 0, 1, 1], [], []>} : vector<16x32xbf16>, vector<32x32xbf16>, vector<16x32xf32> -> vector<16x32xf32>
      %c0_13 = arith.constant 0 : index
      %c0_14 = arith.constant 0 : index
      %15 = vector.load %arg4[%c0_13, %c0_14] : memref<1x32xf32, #tpu.memory_space<vmem>>, vector<1x32xf32>
      %16 = vector.broadcast %15 : vector<1x32xf32> to vector<16x32xf32>
      %17 = arith.addf %14, %16 : vector<16x32xf32>
      %cst_15 = arith.constant 5.000000e-01 : f32
      %18 = vector.broadcast %cst_15 : f32 to vector<16x32xf32>
      %19 = arith.mulf %18, %17 : vector<16x32xf32>
      %cst_16 = arith.constant 0.707106769 : f32
      %20 = vector.broadcast %cst_16 : f32 to vector<16x32xf32>
      %21 = arith.mulf %17, %20 : vector<16x32xf32>
      %22 = math.erf %21 : vector<16x32xf32>
      %cst_17 = arith.constant 1.000000e+00 : f32
      %23 = vector.broadcast %cst_17 : f32 to vector<16x32xf32>
      %24 = arith.addf %23, %22 : vector<16x32xf32>
      %25 = arith.mulf %19, %24 : vector<16x32xf32>
      %cst_18 = arith.constant dense<0.000000e+00> : vector<16xf32>
      %26 = vector.multi_reduction <add>, %25, %cst_18 [1] : vector<16x32xf32> to vector<16xf32>
      %27 = vector.shape_cast %26 : vector<16xf32> to vector<16x1xf32>
      %cst_19 = arith.constant 3.200000e+01 : f32
      %28 = vector.broadcast %cst_19 : f32 to vector<16x1xf32>
      %29 = arith.divf %27, %28 : vector<16x1xf32>
      %30 = vector.broadcast %29 : vector<16x1xf32> to vector<16x32xf32>
      %31 = arith.subf %25, %30 : vector<16x32xf32>
      %32 = arith.mulf %31, %31 : vector<16x32xf32>
      %cst_20 = arith.constant dense<0.000000e+00> : vector<16xf32>
      %33 = vector.multi_reduction <add>, %32, %cst_20 [1] : vector<16x32xf32> to vector<16xf32>
      %34 = vector.shape_cast %33 : vector<16xf32> to vector<16x1xf32>
      %cst_21 = arith.constant 3.200000e+01 : f32
      %35 = vector.broadcast %cst_21 : f32 to vector<16x1xf32>
      %36 = arith.divf %34, %35 : vector<16x1xf32>
      %cst_22 = arith.constant 9.99999974E-6 : f32
      %37 = vector.broadcast %cst_22 : f32 to vector<16x1xf32>
      %38 = arith.addf %36, %37 : vector<16x1xf32>
      %39 = math.rsqrt %38 : vector<16x1xf32>
      %40 = vector.broadcast %39 : vector<16x1xf32> to vector<16x32xf32>
      %41 = arith.mulf %31, %40 : vector<16x32xf32>
      %c0_23 = arith.constant 0 : index
      %c0_24 = arith.constant 0 : index
      %42 = vector.load %arg5[%c0_23, %c0_24] : memref<1x32xf32, #tpu.memory_space<vmem>>, vector<1x32xf32>
      %43 = vector.broadcast %42 : vector<1x32xf32> to vector<16x32xf32>
      %44 = arith.mulf %41, %43 : vector<16x32xf32>
      %c0_25 = arith.constant 0 : index
      %c0_26 = arith.constant 0 : index
      %45 = vector.load %arg6[%c0_25, %c0_26] : memref<1x32xf32, #tpu.memory_space<vmem>>, vector<1x32xf32>
      %46 = vector.broadcast %45 : vector<1x32xf32> to vector<16x32xf32>
      %47 = arith.addf %44, %46 : vector<16x32xf32>
      %48 = arith.addf %47, %11 : vector<16x32xf32>
      %49 = arith.truncf %48 : vector<16x32xf32> to vector<16x32xbf16>
      %c0_27 = arith.constant 0 : index
      %c0_28 = arith.constant 0 : index
      %50 = vector.load %arg10[%c0_27, %c0_28] : memref<16x32xbf16, #tpu.memory_space<vmem>>, vector<16x32xbf16>
      tpu.vector_store %arg10[%c0_27, %c0_28], %49 {strides = array<i32>} : memref<16x32xbf16, #tpu.memory_space<vmem>>, vector<16x32xbf16>,
    } else {
    }
    %c0 = arith.constant 0 : index
    %c0_1 = arith.constant 0 : index
    %3 = vector.load %arg10[%c0, %c0_1] : memref<16x32xbf16, #tpu.memory_space<vmem>>, vector<16x32xbf16>
    %c0_2 = arith.constant 0 : index
    %c0_3 = arith.constant 0 : index
    %4 = vector.load %arg7[%c0_2, %c0_3] : memref<32x128xbf16, #tpu.memory_space<vmem>>, vector<32x128xbf16>
    %cst = arith.constant dense<0.000000e+00> : vector<16x128xf32>
    %5 = tpu.matmul %3, %4, %cst {dimension_numbers = #tpu.dot_dimension_numbers<[1], [0], [0], [1], [0, 0, 1, 1], [], []>} : vector<16x32xbf16>, vector<32x128xbf16>, vector<16x128xf32> -> vector<16x128xf32>
    %c0_4 = arith.constant 0 : index
    %c0_5 = arith.constant 0 : index
    %6 = vector.load %arg8[%c0_4, %c0_5] : memref<1x128xf32, #tpu.memory_space<vmem>>, vector<1x128xf32>
    %7 = vector.broadcast %6 : vector<1x128xf32> to vector<16x128xf32>
    %8 = arith.addf %5, %7 : vector<16x128xf32>
    %9 = arith.truncf %8 : vector<16x128xf32> to vector<16x128xbf16>
    %c0_6 = arith.constant 0 : index
    %c0_7 = arith.constant 0 : index
    %10 = vector.load %arg9[%c0_6, %c0_7] : memref<16x128xbf16, #tpu.memory_space<vmem>>, vector<16x128xbf16>
    tpu.vector_store %arg9[%c0_6, %c0_7], %9 {strides = array<i32>} : memref<16x128xbf16, #tpu.memory_space<vmem>>, vector<16x128xbf16>,
    return
  }
  func.func @transform_0(%arg0: i32, %arg1: i32) -> (i32, i32) {
    %c0_i32 = arith.constant 0 : i32
    %c0_i32_0 = arith.constant 0 : i32
    return %arg0, %c0_i32 : i32, i32
  }
  func.func @transform_1(%arg0: i32, %arg1: i32) -> (i32, i32) {
    %c0_i32 = arith.constant 0 : i32
    %c0_i32_0 = arith.constant 0 : i32
    %c0_i32_1 = arith.constant 0 : i32
    return %c0_i32, %c0_i32_0 : i32, i32
  }
  func.func @transform_2(%arg0: i32, %arg1: i32) -> (i32, i32) {
    %c0_i32 = arith.constant 0 : i32
    %c0_i32_0 = arith.constant 0 : i32
    %c0_i32_1 = arith.constant 0 : i32
    return %c0_i32, %c0_i32_0 : i32, i32
  }
  func.func @transform_3(%arg0: i32, %arg1: i32) -> (i32, i32) {
    %c0_i32 = arith.constant 0 : i32
    %c0_i32_0 = arith.constant 0 : i32
    %c0_i32_1 = arith.constant 0 : i32
    return %c0_i32, %c0_i32_0 : i32, i32
  }
  func.func @transform_4(%arg0: i32, %arg1: i32) -> (i32, i32) {
    %c0_i32 = arith.constant 0 : i32
    %c0_i32_0 = arith.constant 0 : i32
    %c0_i32_1 = arith.constant 0 : i32
    return %c0_i32, %c0_i32_0 : i32, i32
  }
  func.func @transform_5(%arg0: i32, %arg1: i32) -> (i32, i32) {
    %c0_i32 = arith.constant 0 : i32
    %c0_i32_0 = arith.constant 0 : i32
    return %c0_i32, %arg1 : i32, i32
  }
  func.func @transform_6(%arg0: i32, %arg1: i32) -> (i32, i32) {
    %c0_i32 = arith.constant 0 : i32
    %c0_i32_0 = arith.constant 0 : i32
    return %c0_i32, %arg1 : i32, i32
  }
  func.func @transform_7(%arg0: i32, %arg1: i32) -> (i32, i32) {
    %c0_i32 = arith.constant 0 : i32
    return %arg0, %arg1 : i32, i32
  }
}

</mosaic_0001>

<llo_original>
// kernel: tpu_custom_call.1
$region0: #{tpu_custom_call.1}
  #allocation0 [shape = 'u32[]', space=smem, size = 0x4, offset = 0x4, fixed_abs, tag = 'smem constant byte address 0x4 - core index']
  #allocation1 [shape = 'u32[144,128]{1,0:T(1,128)}', space=vmem, size = 0x12000, scoped, tag = 'internal scratch']
  #allocation2 [shape = 'bf16[16,32]{1,0:T(16,128)(2,1)}', space=vmem, size = 0x1000, scoped, tag = 'scratch operand']
  %s0 = inlined_call_operand.hbm [shape: f32[16,32], index: 0, kind: input, shape index: {}]
  %s1 = inlined_call_operand.hbm [shape: bf16[32,32], index: 1, kind: input, shape index: {}]
  %s2 = inlined_call_operand.vmem [shape: f32[1,32], index: 2, kind: input, shape index: {}]
  %s3 = inlined_call_operand.vmem [shape: f32[1,32], index: 3, kind: input, shape index: {}]
  %s4 = inlined_call_operand.hbm [shape: f32[1,32], index: 4, kind: input, shape index: {}]
  %s5 = inlined_call_operand.vmem [shape: bf16[32,128], index: 5, kind: input, shape index: {}]
  %s6 = inlined_call_operand.vmem [shape: f32[1,128], index: 6, kind: input, shape index: {}]
  %s7 = inlined_call_operand.hbm [shape: bf16[16,128], index: 7, kind: output, shape index: {}]
  %s8 = sld [smem:[#allocation0]]
  $region54: #{tpu_custom_call.1} parent=0
    _
  %s10 = ssub.s32 1, %s8
  %s11 = scalar_select 0, %s10, %s8
  $region1: #{tpu_custom_call.1} parent=0
    #allocation3 [shape = 'u8[8192]{0}', space=vmem, size = 0x2000, scoped, tag = 'input window, operand 0, single buffered']
    #allocation4 [shape = 's32[1]{0}', space=sflag, size = 0x4, scoped, tag = 'scoped memory for tpu_custom_call.1']
    #allocation5 [shape = 's32[1]{0}', space=sflag, size = 0x4, scoped, tag = 'scoped memory for tpu_custom_call.1']
    #allocation6 [shape = 'u8[8192]{0}', space=vmem, size = 0x2000, scoped, tag = 'input window, operand 1, single buffered']
    #allocation7 [shape = 's32[1]{0}', space=sflag, size = 0x4, scoped, tag = 'scoped memory for tpu_custom_call.1']
    #allocation8 [shape = 'u8[512]{0}', space=vmem, size = 0x400, scoped, tag = 'input window, operand 4, single buffered']
    #allocation9 [shape = 'u8[4096]{0}', space=vmem, size = 0x1000, scoped, tag = 'output window, operand 0, single buffered']
    %12 = vsyncpa [#allocation4], 0
    %13 = vsyncpa [#allocation7], 0
    %14 = vsyncpa [#allocation5], 0
    // Predicated region
    $region2: #{tpu_custom_call.1} parent=1 // pred_check
      _
    $region3: #{tpu_custom_call.1} parent=1 // pred_check_branch
      %16 = sbr.rel (0) target = $region5
    $region4: #{tpu_custom_call.1} parent=1 // pred_region
      %s18 = ssub.s32 256, 256
      %19 = vsyncadd [#allocation4], %s18
      %s20 = sshll.u32 [#allocation3], 4
      %s21 = int_to_ptr.vmem [resolvable:$true] %s20
      %26 = dma.hbm_to_vmem [thread:$0]  %s0, 256, %s21, [#allocation4], 128, 128, 8
    $region5: #{tpu_custom_call.1} parent=1 // pred_fallthru
      _
    // Predicated region
    $region6: #{tpu_custom_call.1} parent=1 // pred_check
      _
    $region7: #{tpu_custom_call.1} parent=1 // pred_check_branch
      %28 = sbr.rel (0) target = $region9
    $region8: #{tpu_custom_call.1} parent=1 // pred_region
      %s30 = ssub.s32 256, 256
      %31 = vsyncadd [#allocation7], %s30
      %s32 = sshll.u32 [#allocation6], 4
      %s33 = int_to_ptr.vmem [resolvable:$true] %s32
      %38 = dma.hbm_to_vmem [thread:$0]  %s1, 256, %s33, [#allocation7], 64, 64, 4
    $region9: #{tpu_custom_call.1} parent=1 // pred_fallthru
      _
    // Predicated region
    $region10: #{tpu_custom_call.1} parent=1 // pred_check
      _
    $region11: #{tpu_custom_call.1} parent=1 // pred_check_branch
      %40 = sbr.rel (0) target = $region13
    $region12: #{tpu_custom_call.1} parent=1 // pred_region
      _
    $region13: #{tpu_custom_call.1} parent=1 // pred_fallthru
      _
    // Predicated region
    $region14: #{tpu_custom_call.1} parent=1 // pred_check
      _
    $region15: #{tpu_custom_call.1} parent=1 // pred_check_branch
      %42 = sbr.rel (0) target = $region17
    $region16: #{tpu_custom_call.1} parent=1 // pred_region
      _
    $region17: #{tpu_custom_call.1} parent=1 // pred_fallthru
      _
    // Predicated region
    $region18: #{tpu_custom_call.1} parent=1 // pred_check
      _
    $region19: #{tpu_custom_call.1} parent=1 // pred_check_branch
      %44 = sbr.rel (0) target = $region21
    $region20: #{tpu_custom_call.1} parent=1 // pred_region
      %s46 = ssub.s32 16, 16
      %47 = vsyncadd [#allocation7], %s46
      %s49 = sshll.u32 [#allocation8], 4
      %s50 = int_to_ptr.vmem [resolvable:$true] %s49
      %52 = dma.hbm_to_vmem [thread:$0]  %s4, 16, %s50, [#allocation7]
    $region21: #{tpu_custom_call.1} parent=1 // pred_fallthru
      _
    // Predicated region
    $region22: #{tpu_custom_call.1} parent=1 // pred_check
      _
    $region23: #{tpu_custom_call.1} parent=1 // pred_check_branch
      %54 = sbr.rel (0) target = $region25
    $region24: #{tpu_custom_call.1} parent=1 // pred_region
      _
    $region25: #{tpu_custom_call.1} parent=1 // pred_fallthru
      _
    // Predicated region
    $region26: #{tpu_custom_call.1} parent=1 // pred_check
      _
    $region27: #{tpu_custom_call.1} parent=1 // pred_check_branch
      %56 = sbr.rel (0) target = $region29
    $region28: #{tpu_custom_call.1} parent=1 // pred_region
      _
    $region29: #{tpu_custom_call.1} parent=1 // pred_fallthru
      _
    // Predicated region
    $region30: #{tpu_custom_call.1} parent=1 // pred_check
      _
    $region31: #{tpu_custom_call.1} parent=1 // pred_check_branch
      %58 = sbr.rel (0) target = $region33
    $region32: #{tpu_custom_call.1} parent=1 // pred_region
      %59 = dma.done [#allocation4], 256
    $region33: #{tpu_custom_call.1} parent=1 // pred_fallthru
      _
    // Predicated region
    $region34: #{tpu_custom_call.1} parent=1 // pred_check
      _
    $region35: #{tpu_custom_call.1} parent=1 // pred_check_branch
      %61 = sbr.rel (0) target = $region37
    $region36: #{tpu_custom_call.1} parent=1 // pred_region
      %62 = dma.done [#allocation7], 256
    $region37: #{tpu_custom_call.1} parent=1 // pred_fallthru
      _
    // Predicated region
    $region38: #{tpu_custom_call.1} parent=1 // pred_check
      _
    $region39: #{tpu_custom_call.1} parent=1 // pred_check_branch
      %64 = sbr.rel (0) target = $region41
    $region40: #{tpu_custom_call.1} parent=1 // pred_region
      %65 = dma.done [#allocation7], 16
    $region41: #{tpu_custom_call.1} parent=1 // pred_fallthru
      _
    %p67 = scmp.eq.s32.totalorder 0, 0
    // Predicated region
    $region42: #{tpu_custom_call.1} parent=1 // pred_check
      %p68 = pneg %p67
    $region43: #{tpu_custom_call.1} parent=1 // pred_check_branch
      %70 = sbr.rel (%p68) target = $region45
    $region44: #{tpu_custom_call.1} parent=1 // pred_region
      %v71 = vld [vmem:[#allocation3] sm:$0xff]
      %v72 = vld [vmem:[#allocation3 + $0x8] sm:$0xff]
      %v73 = vpack.c.bf16 %v72, %v71
      %v74 = vld [vmem:[#allocation6] sm:$0xf]
      %v75 = vld [vmem:[#allocation6 + $0x4] sm:$0xf]
      %v76 = vld [vmem:[#allocation6 + $0x8] sm:$0xf]
      %v77 = vld [vmem:[#allocation6 + $0xc] sm:$0xf]
      %v78 = vld [vmem:[%s2] sm:$0x1]
      %v80 = vlaneseq
      %v81 = vshrl.u32 %v80, 7
      %v82 = vsub.s32 0, %v81
      %v83 = vrot.slane %v78, %v82
      %v89 = vunpack.c.l.b16 %v74
      %v90 = vunpack.c.l.b16 %v75
      %v91 = vunpack.c.l.b16 %v76
      %v92 = vunpack.c.l.b16 %v77
      %v93 = vpack.c.b16 %v90, %v89
      %v94 = vpack.c.b16 %v92, %v91
      %vm97 = vcmask 261120
      %v99 = vsel %vm97, %v73, 0
      %101 = vmatprep.subr.bf16.mxu0 0
      %102 = vmatpush1.bf16.msra.mxu0 %v93
      %103 = vmatprep.subr.bf16.mxu0 0
      %104 = vmatpush1.bf16.msra.mxu0 %v94
      %105 = vmatprep.subr.bf16.mxu0 0
      %106 = vmatpush1.bf16.msra.mxu0 0
      %107 = vmatprep.subr.bf16.mxu0 0
      %108 = vmatpush1.bf16.msra.mxu0 0
      %109 = vmatprep.subr.bf16.mxu0 0
      %110 = vmatpush1.bf16.msra.mxu0 0
      %111 = vmatprep.subr.bf16.mxu0 0
      %112 = vmatpush1.bf16.msra.mxu0 0
      %113 = vmatprep.subr.bf16.mxu0 0
      %114 = vmatpush1.bf16.msra.mxu0 0
      %115 = vmatprep.subr.bf16.mxu0 0
      %116 = vmatpush1.bf16.msra.mxu0 0
      %117 = vmatprep.subr.bf16.mxu0 0
      %118 = vmatpush1.bf16.msra.mxu0 0
      %119 = vmatprep.subr.bf16.mxu0 0
      %120 = vmatpush1.bf16.msra.mxu0 0
      %121 = vmatprep.subr.bf16.mxu0 0
      %122 = vmatpush1.bf16.msra.mxu0 0
      %123 = vmatprep.subr.bf16.mxu0 0
      %124 = vmatpush1.bf16.msra.mxu0 0
      %125 = vmatprep.subr.bf16.mxu0 0
      %126 = vmatpush1.bf16.msra.mxu0 0
      %127 = vmatprep.subr.bf16.mxu0 0
      %128 = vmatpush1.bf16.msra.mxu0 0
      %129 = vmatprep.subr.bf16.mxu0 0
      %130 = vmatpush1.bf16.msra.mxu0 0
      %131 = vmatprep.subr.bf16.mxu0 0
      %132 = vmatpush1.bf16.msra.mxu0 0
      %133 = vmatprep.mubr.bf16.mxu0 0
      %134 = vmatmul.mubr.bf16.gmra.mrb[0].mxu0 %v99
      %v135 = vpop.f32.mrb[0].mxu0
      %v136 = vadd.f32 %v83, %v135
      %v137 = vpop.f32.mrb[0].mxu0
      %v138 = vpop.f32.mrb[0].mxu0
      %v139 = vadd.f32 %v83, %v138
      %v140 = vpop.f32.mrb[0].mxu0
      %141 = vdwg.mxu0
      %v142 = vmul.f32 %v136, 0.5
      %v143 = vmul.f32 %v139, 0.5
      %v144 = vmul.f32 %v136, 0.70710677
      %v145 = vmul.f32 %v139, 0.70710677
      %v146 = verf.f32.pop %v144
      %v147 = verf.f32.pop %v145
      %v148 = vadd.f32 %v146, 1.0
      %v149 = vadd.f32 %v147, 1.0
      %v150 = vmul.f32 %v142, %v148
      %v151 = vmul.f32 %v143, %v149
      %v152 = vsel %vm97, %v150, 0.0
      %153 = vadd.xlane.f32.xlu0 %v152
      %v154 = vpop.xlane.xlu0 %153
      %v155 = vsel %vm97, %v151, 0.0
      %156 = vadd.xlane.f32.xlu0 %v155
      %v157 = vpop.xlane.xlu0 %156
      %v158 = vrcp.pop 32.0
      %v159 = vmul.f32 %v154, %v158
      %v160 = vmul.f32 %v157, %v158
      %v161 = vsub.f32 %v150, %v159
      %v162 = vsub.f32 %v151, %v160
      %v163 = vmul.f32 %v161, %v161
      %v164 = vmul.f32 %v162, %v162
      %v165 = vsel %vm97, %v163, 0.0
      %166 = vadd.xlane.f32.xlu0 %v165
      %v167 = vpop.xlane.xlu0 %166
      %v168 = vsel %vm97, %v164, 0.0
      %169 = vadd.xlane.f32.xlu0 %v168
      %v170 = vpop.xlane.xlu0 %169
      %v171 = vmul.f32 %v167, %v158
      %v172 = vmul.f32 %v170, %v158
      %v173 = vadd.f32 %v171, 1e-05
      %v174 = vadd.f32 %v172, 1e-05
      %v175 = vrsqrt.pop %v173
      %v176 = vrsqrt.pop %v174
      %v177 = vmul.f32 %v161, %v175
      %v178 = vmul.f32 %v162, %v176
      %v179 = vld [vmem:[%s3] sm:$0x1]
      %v181 = vlaneseq
      %v182 = vshrl.u32 %v181, 7
      %v183 = vsub.s32 0, %v182
      %v184 = vrot.slane %v179, %v183
      %v186 = vmul.f32 %v177, %v184
      %v187 = vmul.f32 %v178, %v184
      %v188 = vld [vmem:[#allocation8] sm:$0x1]
      %v190 = vlaneseq
      %v191 = vshrl.u32 %v190, 7
      %v192 = vsub.s32 0, %v191
      %v193 = vrot.slane %v188, %v192
      %v195 = vadd.f32 %v186, %v193
      %v196 = vadd.f32 %v187, %v193
      %v197 = vadd.f32 %v195, %v71
      %v198 = vadd.f32 %v196, %v72
      %v199 = vpack.c.bf16 %v198, %v197
      %200 = vst.msk [vmem:[#allocation2] sm:$0xff] %vm97, %v199
    $region45: #{tpu_custom_call.1} parent=1 // pred_fallthru
      _
    %v201 = vld [vmem:[#allocation2] sm:$0xff]
    %v202 = vld [vmem:[%s5] sm:$0xf]
    %v203 = vld [vmem:[%s5 + $0x4] sm:$0xf]
    %v204 = vld [vmem:[%s5 + $0x8] sm:$0xf]
    %v205 = vld [vmem:[%s5 + $0xc] sm:$0xf]
    %v206 = vld [vmem:[%s6] sm:$0x1]
    %v208 = vlaneseq
    %v209 = vshrl.u32 %v208, 7
    %v210 = vsub.s32 0, %v209
    %v211 = vrot.slane %v206, %v210
    %v217 = vunpack.c.l.b16 %v202
    %v218 = vunpack.c.l.b16 %v203
    %v219 = vunpack.c.l.b16 %v204
    %v220 = vunpack.c.l.b16 %v205
    %v221 = vpack.c.b16 %v218, %v217
    %v222 = vpack.c.b16 %v220, %v219
    %vm225 = vcmask 261120
    %v227 = vsel %vm225, %v201, 0
    %229 = vmatprep.subr.bf16.mxu0 0
    %230 = vmatpush1.bf16.msra.mxu0 %v221
    %231 = vmatprep.subr.bf16.mxu0 0
    %232 = vmatpush1.bf16.msra.mxu0 %v222
    %233 = vmatprep.subr.bf16.mxu0 0
    %234 = vmatpush1.bf16.msra.mxu0 0
    %235 = vmatprep.subr.bf16.mxu0 0
    %236 = vmatpush1.bf16.msra.mxu0 0
    %237 = vmatprep.subr.bf16.mxu0 0
    %238 = vmatpush1.bf16.msra.mxu0 0
    %239 = vmatprep.subr.bf16.mxu0 0
    %240 = vmatpush1.bf16.msra.mxu0 0
    %241 = vmatprep.subr.bf16.mxu0 0
    %242 = vmatpush1.bf16.msra.mxu0 0
    %243 = vmatprep.subr.bf16.mxu0 0
    %244 = vmatpush1.bf16.msra.mxu0 0
    %245 = vmatprep.subr.bf16.mxu0 0
    %246 = vmatpush1.bf16.msra.mxu0 0
    %247 = vmatprep.subr.bf16.mxu0 0
    %248 = vmatpush1.bf16.msra.mxu0 0
    %249 = vmatprep.subr.bf16.mxu0 0
    %250 = vmatpush1.bf16.msra.mxu0 0
    %251 = vmatprep.subr.bf16.mxu0 0
    %252 = vmatpush1.bf16.msra.mxu0 0
    %253 = vmatprep.subr.bf16.mxu0 0
    %254 = vmatpush1.bf16.msra.mxu0 0
    %255 = vmatprep.subr.bf16.mxu0 0
    %256 = vmatpush1.bf16.msra.mxu0 0
    %257 = vmatprep.subr.bf16.mxu0 0
    %258 = vmatpush1.bf16.msra.mxu0 0
    %259 = vmatprep.subr.bf16.mxu0 0
    %260 = vmatpush1.bf16.msra.mxu0 0
    %261 = vmatprep.mubr.bf16.mxu0 0
    %262 = vmatmul.mubr.bf16.gmra.mrb[0].mxu0 %v227
    %v263 = vpop.f32.mrb[0].mxu0
    %v264 = vadd.f32 %v211, %v263
    %v265 = vpop.f32.mrb[0].mxu0
    %v266 = vpop.f32.mrb[0].mxu0
    %v267 = vadd.f32 %v211, %v266
    %v268 = vpop.f32.mrb[0].mxu0
    %269 = vdwg.mxu0
    %v270 = vpack.c.bf16 %v267, %v264
    %v272 = vunpack.c.l.b16 %v270
    %v273 = vunpack.c.h.b16 %v270
    %v274 = vpack.c.b16 %v272, %v272
    %v275 = vpack.c.b16 %v273, %v273
    %278 = vst [vmem:[#allocation9] sm:$0xf] %v274
    %279 = vst [vmem:[#allocation9 + $0x4] sm:$0xf] %v275
    // Predicated region
    $region46: #{tpu_custom_call.1} parent=1 // pred_check
      _
    $region47: #{tpu_custom_call.1} parent=1 // pred_check_branch
      %281 = sbr.rel (0) target = $region49
    $region48: #{tpu_custom_call.1} parent=1 // pred_region
      %s283 = ssub.s32 128, 128
      %284 = vsyncadd [#allocation5], %s283
      %s285 = sshll.u32 [#allocation9], 4
      %s286 = int_to_ptr.vmem [resolvable:$true] %s285
      %291 = dma.vmem_to_hbm [thread:$0]  %s286, 128, %s7, [#allocation5], 64, 64, 4
    $region49: #{tpu_custom_call.1} parent=1 // pred_fallthru
      _
    // Predicated region
    $region50: #{tpu_custom_call.1} parent=1 // pred_check
      _
    $region51: #{tpu_custom_call.1} parent=1 // pred_check_branch
      %293 = sbr.rel (0) target = $region53
    $region52: #{tpu_custom_call.1} parent=1 // pred_region
      %294 = dma.done [#allocation5], 128
    $region53: #{tpu_custom_call.1} parent=1 // pred_fallthru
      _
    %295 = vsyncpa [#allocation4], 1
    %296 = vsyncpa [#allocation7], 1
    %297 = vsyncpa [#allocation5], 1

</llo_original>
